<compile_context>
chip_gen: v7x
topology: tpu7x:2x2x1
jax: 0.10.0
libtpu: 0.0.40
codegen_flags: <defaults>
</compile_context>

<pallas_src>
import math
import functools

import jax
import jax.numpy as jnp
from jax.experimental import pallas as pl
from jax.experimental.pallas import tpu as pltpu


def critic_kernel(nodes_ref, pack_ref, w2_ref, b3_ref, o_ref, *, in_c, hid):
    # node_h.sum(dim=0): reduce over the leading node axis (N vreg adds).
    x = jnp.sum(nodes_ref[...], axis=0)                     # (B, in_c) f32

    # Static views into the packed parameter slab (rows: w1 | b1 | b2 | w3^T).
    w1     = pack_ref[0:in_c, :]                             # (in_c, hid)
    b1     = pack_ref[in_c:in_c + 1, :]                      # (1, hid)
    b2     = pack_ref[in_c + 1:in_c + 2, :]                  # (1, hid)
    w3_row = pack_ref[in_c + 2:in_c + 3, :]                  # (1, hid)

    # Layer 1: Linear(in -> hidden) + ReLU   (MXU)
    h = jnp.dot(x, w1, preferred_element_type=jnp.float32)
    h = jnp.maximum(h + b1, 0.0)

    # Layer 2: Linear(hidden -> hidden) + ReLU   (MXU)
    h = jnp.dot(h, w2_ref[...], preferred_element_type=jnp.float32)
    h = jnp.maximum(h + b2, 0.0)

    # Layer 3: Linear(hidden -> 1) as VPU multiply + lane reduction (XLU),
    # bias added as an SMEM scalar.
    v = jnp.sum(h * w3_row, axis=-1, keepdims=True) + b3_ref[0, 0]

    o_ref[...] = v.astype(o_ref.dtype)


def pack_params(params):
    """Pack small operands into one lane-dense (in_c+3, hidden) f32 slab.

    Rows: [0:in_c] = w1, [in_c] = b1, [in_c+1] = b2, [in_c+2] = w3^T.
    Returns (slab, w2, b3_scalar).  Do this once; reuse across calls.
    """
    w1, b1 = params["w1"], params["b1"]
    w2, b2 = params["w2"], params["b2"]
    w3, b3 = params["w3"], params["b3"]
    hid = w2.shape[0]
    slab = jnp.concatenate(
        [w1, b1.reshape(1, hid), b2.reshape(1, hid), w3.reshape(1, hid)],
        axis=0,
    ).astype(jnp.float32)
    return slab, w2.astype(jnp.float32), b3.reshape(1, 1).astype(jnp.float32)


def critic_pallas(node_h, slab, w2, b3):
    """node_h: (N, B, in_chnl) f32. Returns (B, 1) critic values.

    Single kernel invocation (no grid); node_h, the packed slab and w2 are
    DMA'd once into VMEM, b3 rides SMEM.
    """
    N, B, in_c = node_h.shape
    hid = w2.shape[0]
    out_c = 1

    vmem = lambda: pl.BlockSpec(memory_space=pltpu.MemorySpace.VMEM)
    smem = lambda: pl.BlockSpec(memory_space=pltpu.MemorySpace.SMEM)

    kernel = functools.partial(critic_kernel, in_c=in_c, hid=hid)
    return pl.pallas_call(
        kernel,
        out_shape=jax.ShapeDtypeStruct((B, out_c), node_h.dtype),
        in_specs=[vmem(), vmem(), vmem(), smem()],
        out_specs=vmem(),
    )(node_h, slab, w2, b3)


def init_linear(key, fan_in, fan_out):
    """Deterministic init mimicking torch.nn.Linear (uniform +-1/sqrt(fan_in)).
    Weight is returned already transposed to (fan_in, fan_out)."""
    kw, kb = jax.random.split(key)
    bound = 1.0 / math.sqrt(fan_in)
    w_t = jax.random.uniform(kw, (fan_in, fan_out), jnp.float32, -bound, bound)
    b = jax.random.uniform(kb, (1, fan_out), jnp.float32, -bound, bound)
    return w_t, b


def critic_reference(node_h, p):
    x = node_h.sum(axis=0)
    h = jnp.maximum(x @ p["w1"] + p["b1"], 0.0)
    h = jnp.maximum(h @ p["w2"] + p["b2"], 0.0)
    return h @ p["w3"] + p["b3"]


if __name__ == "__main__":
    # CriticNet defaults: num_mlp_layer=2, in_chnl=8, hidden_chnl=256, out_chnl=1
    in_chnl, hidden_chnl, out_chnl = 8, 256, 1
    num_nodes, batch = 10, 4

    key = jax.random.PRNGKey(0)
    k_x, k1, k2, k3 = jax.random.split(key, 4)

    node_h = jax.random.normal(k_x, (num_nodes, batch, in_chnl), jnp.float32)
    w1, b1 = init_linear(k1, in_chnl, hidden_chnl)
    w2, b2 = init_linear(k2, hidden_chnl, hidden_chnl)
    w3, b3 = init_linear(k3, hidden_chnl, out_chnl)
    params = dict(w1=w1, b1=b1, w2=w2, b2=b2, w3=w3, b3=b3)

    slab, w2_packed, b3_packed = pack_params(params)

    out = critic_pallas(node_h, slab, w2_packed, b3_packed)
    out = jax.block_until_ready(out)

    ref = critic_reference(node_h, params)
    assert out.shape == (batch, out_chnl)
    assert jnp.allclose(out, ref, atol=1e-4, rtol=1e-5)

    print("KERNEL_OK")
</pallas_src>

<mosaic_0001>
module attributes {stable_mosaic.version = 11 : i64} {
  func.func @critic_kernel(%arg0: memref<10x4x8xf32, #tpu.memory_space<vmem>>, %arg1: memref<11x256xf32, #tpu.memory_space<vmem>>, %arg2: memref<256x256xf32, #tpu.memory_space<vmem>>, %arg3: memref<1x1xf32, #tpu.memory_space<smem>>, %arg4: memref<4x1xf32, #tpu.memory_space<vmem>>) attributes {dimension_semantics = [], scalar_prefetch = 0 : i64, scratch_operands = 0 : i64, tpu.core_type = #tpu.core_type<tc>} {
    %c0 = arith.constant 0 : index
    %c0_0 = arith.constant 0 : index
    %c0_1 = arith.constant 0 : index
    %0 = vector.load %arg0[%c0, %c0_0, %c0_1] : memref<10x4x8xf32, #tpu.memory_space<vmem>>, vector<10x4x8xf32>
    %cst = arith.constant dense<0.000000e+00> : vector<4x8xf32>
    %1 = vector.multi_reduction <add>, %0, %cst [0] : vector<10x4x8xf32> to vector<4x8xf32>
    %c0_2 = arith.constant 0 : index
    %c0_3 = arith.constant 0 : index
    %2 = vector.load %arg1[%c0_2, %c0_3] : memref<11x256xf32, #tpu.memory_space<vmem>>, vector<8x256xf32>
    %c8 = arith.constant 8 : index
    %c0_4 = arith.constant 0 : index
    %3 = vector.load %arg1[%c8, %c0_4] : memref<11x256xf32, #tpu.memory_space<vmem>>, vector<1x256xf32>
    %c9 = arith.constant 9 : index
    %c0_5 = arith.constant 0 : index
    %4 = vector.load %arg1[%c9, %c0_5] : memref<11x256xf32, #tpu.memory_space<vmem>>, vector<1x256xf32>
    %c10 = arith.constant 10 : index
    %c0_6 = arith.constant 0 : index
    %5 = vector.load %arg1[%c10, %c0_6] : memref<11x256xf32, #tpu.memory_space<vmem>>, vector<1x256xf32>
    %cst_7 = arith.constant dense<0.000000e+00> : vector<4x256xf32>
    %6 = tpu.matmul %1, %2, %cst_7 {dimension_numbers = #tpu.dot_dimension_numbers<[1], [0], [0], [1], [0, 0, 1, 1], [], []>} : vector<4x8xf32>, vector<8x256xf32>, vector<4x256xf32> -> vector<4x256xf32>
    %7 = vector.broadcast %3 : vector<1x256xf32> to vector<4x256xf32>
    %8 = arith.addf %6, %7 : vector<4x256xf32>
    %cst_8 = arith.constant 0.000000e+00 : f32
    %9 = vector.broadcast %cst_8 : f32 to vector<4x256xf32>
    %10 = arith.maximumf %8, %9 : vector<4x256xf32>
    %c0_9 = arith.constant 0 : index
    %c0_10 = arith.constant 0 : index
    %11 = vector.load %arg2[%c0_9, %c0_10] : memref<256x256xf32, #tpu.memory_space<vmem>>, vector<256x256xf32>
    %cst_11 = arith.constant dense<0.000000e+00> : vector<4x256xf32>
    %12 = tpu.matmul %10, %11, %cst_11 {dimension_numbers = #tpu.dot_dimension_numbers<[1], [0], [0], [1], [0, 0, 1, 1], [], []>} : vector<4x256xf32>, vector<256x256xf32>, vector<4x256xf32> -> vector<4x256xf32>
    %13 = vector.broadcast %4 : vector<1x256xf32> to vector<4x256xf32>
    %14 = arith.addf %12, %13 : vector<4x256xf32>
    %cst_12 = arith.constant 0.000000e+00 : f32
    %15 = vector.broadcast %cst_12 : f32 to vector<4x256xf32>
    %16 = arith.maximumf %14, %15 : vector<4x256xf32>
    %17 = vector.broadcast %5 : vector<1x256xf32> to vector<4x256xf32>
    %18 = arith.mulf %16, %17 : vector<4x256xf32>
    %cst_13 = arith.constant dense<0.000000e+00> : vector<4xf32>
    %19 = vector.multi_reduction <add>, %18, %cst_13 [1] : vector<4x256xf32> to vector<4xf32>
    %20 = vector.shape_cast %19 : vector<4xf32> to vector<4x1xf32>
    %c0_14 = arith.constant 0 : index
    %c0_15 = arith.constant 0 : index
    %21 = memref.load %arg3[%c0_14, %c0_15] : memref<1x1xf32, #tpu.memory_space<smem>>
    %22 = vector.broadcast %21 : f32 to vector<4x1xf32>
    %23 = arith.addf %20, %22 : vector<4x1xf32>
    %c0_16 = arith.constant 0 : index
    %c0_17 = arith.constant 0 : index
    %24 = vector.load %arg4[%c0_16, %c0_17] : memref<4x1xf32, #tpu.memory_space<vmem>>, vector<4x1xf32>
    tpu.vector_store %arg4[%c0_16, %c0_17], %23 {strides = array<i32>} : memref<4x1xf32, #tpu.memory_space<vmem>>, vector<4x1xf32>,
    return
  }
}

</mosaic_0001>

<llo_original>
// kernel: tpu_custom_call.1
$region0: #{tpu_custom_call.1}
  #allocation0 [shape = 'u32[]', space=smem, size = 0x4, offset = 0x4, fixed_abs, tag = 'smem constant byte address 0x4 - core index']
  #allocation1 [shape = 'u32[144,128]{1,0:T(1,128)}', space=vmem, size = 0x12000, scoped, tag = 'internal scratch']
  #allocation2 [shape = 'f32[1,1]{1,0:T(1,128)S(6)}', space=smem, size = 0x200, scoped, tag = 'scoped memory for tpu_custom_call.1']
  %s0 = inlined_call_operand.vmem [shape: f32[10,4,8], index: 0, kind: input, shape index: {}]
  %s1 = inlined_call_operand.vmem [shape: f32[11,256], index: 1, kind: input, shape index: {}]
  %s2 = inlined_call_operand.hbm [shape: f32[256,256], index: 2, kind: input, shape index: {}]
  %s3 = inlined_call_operand.<no memory space> [shape: f32[1,1], index: 3, kind: input, shape index: {}]
  %s4 = inlined_call_operand.vmem [shape: f32[4,1], index: 4, kind: output, shape index: {}]
  %s5 = sld [smem:[#allocation0]]
  $region30: #{tpu_custom_call.1} parent=0
    _
  %s7 = ssub.s32 1, %s5
  %s8 = scalar_select 0, %s7, %s5
  %9 = sst [smem:[#allocation2]] %s3
  $region1: #{tpu_custom_call.1} parent=0
    #allocation3 [shape = 'u8[262144]{0}', space=vmem, size = 0x40000, scoped, tag = 'input window, operand 2, single buffered']
    #allocation4 [shape = 's32[1]{0}', space=sflag, size = 0x4, scoped, tag = 'scoped memory for tpu_custom_call.1']
    %10 = vsyncpa [#allocation4], 0
    // Predicated region
    $region2: #{tpu_custom_call.1} parent=1 // pred_check
      _
    $region3: #{tpu_custom_call.1} parent=1 // pred_check_branch
      %12 = sbr.rel (0) target = $region5
    $region4: #{tpu_custom_call.1} parent=1 // pred_region
      _
    $region5: #{tpu_custom_call.1} parent=1 // pred_fallthru
      _
    // Predicated region
    $region6: #{tpu_custom_call.1} parent=1 // pred_check
      _
    $region7: #{tpu_custom_call.1} parent=1 // pred_check_branch
      %14 = sbr.rel (0) target = $region9
    $region8: #{tpu_custom_call.1} parent=1 // pred_region
      _
    $region9: #{tpu_custom_call.1} parent=1 // pred_fallthru
      _
    // Predicated region
    $region10: #{tpu_custom_call.1} parent=1 // pred_check
      _
    $region11: #{tpu_custom_call.1} parent=1 // pred_check_branch
      %16 = sbr.rel (0) target = $region13
    $region12: #{tpu_custom_call.1} parent=1 // pred_region
      %s18 = ssub.s32 8192, 8192
      %19 = vsyncadd [#allocation4], %s18
      %s20 = sshll.u32 [#allocation3], 4
      %s21 = int_to_ptr.vmem [resolvable:$true] %s20
      %26 = dma.hbm_to_vmem [thread:$0]  %s2, 8192, %s21, [#allocation4], 256, 256, 16
    $region13: #{tpu_custom_call.1} parent=1 // pred_fallthru
      _
    // Predicated region
    $region14: #{tpu_custom_call.1} parent=1 // pred_check
      _
    $region15: #{tpu_custom_call.1} parent=1 // pred_check_branch
      %28 = sbr.rel (0) target = $region17
    $region16: #{tpu_custom_call.1} parent=1 // pred_region
      _
    $region17: #{tpu_custom_call.1} parent=1 // pred_fallthru
      _
    // Predicated region
    $region18: #{tpu_custom_call.1} parent=1 // pred_check
      _
    $region19: #{tpu_custom_call.1} parent=1 // pred_check_branch
      %30 = sbr.rel (0) target = $region21
    $region20: #{tpu_custom_call.1} parent=1 // pred_region
      %31 = dma.done [#allocation4], 8192
    $region21: #{tpu_custom_call.1} parent=1 // pred_fallthru
      _
    %v32 = vld [vmem:[%s0] sm:$0xf]
    %v33 = vld [vmem:[%s0 + $0x4] sm:$0xf]
    %v34 = vld [vmem:[%s0 + $0x8] sm:$0xf]
    %v35 = vld [vmem:[%s0 + $0xc] sm:$0xf]
    %v36 = vld [vmem:[%s0 + $0x10] sm:$0xf]
    %v37 = vld [vmem:[%s0 + $0x14] sm:$0xf]
    %v38 = vld [vmem:[%s0 + $0x18] sm:$0xf]
    %v39 = vld [vmem:[%s0 + $0x1c] sm:$0xf]
    %v40 = vld [vmem:[%s0 + $0x20] sm:$0xf]
    %v41 = vld [vmem:[%s0 + $0x24] sm:$0xf]
    %vm42 = vcmask 60416
    %v43 = vsel %vm42, %v32, 0.0
    %v44 = vsel %vm42, %v33, 0.0
    %v45 = vadd.f32 %v43, %v44
    %v46 = vsel %vm42, %v34, 0.0
    %v47 = vadd.f32 %v45, %v46
    %v48 = vsel %vm42, %v35, 0.0
    %v49 = vadd.f32 %v47, %v48
    %v50 = vsel %vm42, %v36, 0.0
    %v51 = vadd.f32 %v49, %v50
    %v52 = vsel %vm42, %v37, 0.0
    %v53 = vadd.f32 %v51, %v52
    %v54 = vsel %vm42, %v38, 0.0
    %v55 = vadd.f32 %v53, %v54
    %v56 = vsel %vm42, %v39, 0.0
    %v57 = vadd.f32 %v55, %v56
    %v58 = vsel %vm42, %v40, 0.0
    %v59 = vadd.f32 %v57, %v58
    %v60 = vsel %vm42, %v41, 0.0
    %v61 = vadd.f32 %v59, %v60
    %v62 = vld [vmem:[%s1] sm:$0xff]
    %v63 = vld [vmem:[%s1 + $0x8] sm:$0xff]
    %s64 = scalar_lea.vmem %s1, 16
    %v65 = vld [vmem:[%s64] ss:$8 sm:$0x3]
    %s66 = scalar_lea.vmem %s1, 17
    %v67 = vld [vmem:[%s66] ss:$8 sm:$0x3]
    %s68 = scalar_lea.vmem %s1, 18
    %v69 = vld [vmem:[%s68] ss:$8 sm:$0x3]
    %v71 = vlaneseq
    %v72 = vshrl.u32 %v71, 7
    %v73 = vsub.s32 0, %v72
    %v74 = vrot.slane %v65, %v73
    %v75 = vlaneseq
    %v76 = vshrl.u32 %v75, 7
    %v77 = vsub.s32 1, %v76
    %v78 = vrot.slane %v65, %v77
    %vm81 = vcmask 64512
    %v83 = vsel %vm81, %v61, 0
    %85 = vmatprep.subr.mxu0 %v63
    %86 = vmatpush1.msra.mxu0 %v62
    %87 = vmatprep.subr.mxu0 0.0
    %88 = vmatpush1.msra.mxu0 0.0
    %89 = vmatprep.subr.mxu0 0.0
    %90 = vmatpush1.msra.mxu0 0.0
    %91 = vmatprep.subr.mxu0 0.0
    %92 = vmatpush1.msra.mxu0 0.0
    %93 = vmatprep.subr.mxu0 0.0
    %94 = vmatpush1.msra.mxu0 0.0
    %95 = vmatprep.subr.mxu0 0.0
    %96 = vmatpush1.msra.mxu0 0.0
    %97 = vmatprep.subr.mxu0 0.0
    %98 = vmatpush1.msra.mxu0 0.0
    %99 = vmatprep.subr.mxu0 0.0
    %100 = vmatpush1.msra.mxu0 0.0
    %101 = vmatprep.subr.mxu0 0.0
    %102 = vmatpush1.msra.mxu0 0.0
    %103 = vmatprep.subr.mxu0 0.0
    %104 = vmatpush1.msra.mxu0 0.0
    %105 = vmatprep.subr.mxu0 0.0
    %106 = vmatpush1.msra.mxu0 0.0
    %107 = vmatprep.subr.mxu0 0.0
    %108 = vmatpush1.msra.mxu0 0.0
    %109 = vmatprep.subr.mxu0 0.0
    %110 = vmatpush1.msra.mxu0 0.0
    %111 = vmatprep.subr.mxu0 0.0
    %112 = vmatpush1.msra.mxu0 0.0
    %113 = vmatprep.subr.mxu0 0.0
    %114 = vmatpush1.msra.mxu0 0.0
    %115 = vmatprep.subr.mxu0 0.0
    %116 = vmatpush1.msra.mxu0 0.0
    %117 = vmatprep.subr.mxu0 0.0
    %118 = vmatpush1.msra.mxu0 0.0
    %119 = vmatprep.subr.mxu0 0.0
    %120 = vmatpush1.msra.mxu0 0.0
    %121 = vmatprep.subr.mxu0 0.0
    %122 = vmatpush1.msra.mxu0 0.0
    %123 = vmatprep.subr.mxu0 0.0
    %124 = vmatpush1.msra.mxu0 0.0
    %125 = vmatprep.subr.mxu0 0.0
    %126 = vmatpush1.msra.mxu0 0.0
    %127 = vmatprep.subr.mxu0 0.0
    %128 = vmatpush1.msra.mxu0 0.0
    %129 = vmatprep.subr.mxu0 0.0
    %130 = vmatpush1.msra.mxu0 0.0
    %131 = vmatprep.subr.mxu0 0.0
    %132 = vmatpush1.msra.mxu0 0.0
    %133 = vmatprep.subr.mxu0 0.0
    %134 = vmatpush1.msra.mxu0 0.0
    %135 = vmatprep.subr.mxu0 0.0
    %136 = vmatpush1.msra.mxu0 0.0
    %137 = vmatprep.subr.mxu0 0.0
    %138 = vmatpush1.msra.mxu0 0.0
    %139 = vmatprep.subr.mxu0 0.0
    %140 = vmatpush1.msra.mxu0 0.0
    %141 = vmatprep.subr.mxu0 0.0
    %142 = vmatpush1.msra.mxu0 0.0
    %143 = vmatprep.subr.mxu0 0.0
    %144 = vmatpush1.msra.mxu0 0.0
    %145 = vmatprep.subr.mxu0 0.0
    %146 = vmatpush1.msra.mxu0 0.0
    %147 = vmatprep.subr.mxu0 0.0
    %148 = vmatpush1.msra.mxu0 0.0
    %149 = vmatprep.mubr.f32.mxu0 0.0
    %150 = vmatmul.mubr.f32.gmra.mrb[0].mxu0 %v83
    %v151 = vpop.f32.mrb[0].mxu0
    %v152 = vadd.f32 %v74, %v151
    %v153 = vpop.f32.mrb[0].mxu0
    %v154 = vadd.f32 %v78, %v153
    %155 = vdwg.mxu0
    %v156 = vmax.f32 %v152, 0.0
    %v157 = vmax.f32 %v154, 0.0
    %v158 = vld [vmem:[#allocation3] sm:$0xff]
    %v159 = vld [vmem:[#allocation3 + $0x8] sm:$0xff]
    %v160 = vld [vmem:[#allocation3 + $0x10] sm:$0xff]
    %v161 = vld [vmem:[#allocation3 + $0x18] sm:$0xff]
    %v162 = vld [vmem:[#allocation3 + $0x20] sm:$0xff]
    %v163 = vld [vmem:[#allocation3 + $0x28] sm:$0xff]
    %v164 = vld [vmem:[#allocation3 + $0x30] sm:$0xff]
    %v165 = vld [vmem:[#allocation3 + $0x38] sm:$0xff]
    %v166 = vld [vmem:[#allocation3 + $0x40] sm:$0xff]
    %v167 = vld [vmem:[#allocation3 + $0x48] sm:$0xff]
    %v168 = vld [vmem:[#allocation3 + $0x50] sm:$0xff]
    %v169 = vld [vmem:[#allocation3 + $0x58] sm:$0xff]
    %v170 = vld [vmem:[#allocation3 + $0x60] sm:$0xff]
    %v171 = vld [vmem:[#allocation3 + $0x68] sm:$0xff]
    %v172 = vld [vmem:[#allocation3 + $0x70] sm:$0xff]
    %v173 = vld [vmem:[#allocation3 + $0x78] sm:$0xff]
    %v174 = vld [vmem:[#allocation3 + $0x80] sm:$0xff]
    %v175 = vld [vmem:[#allocation3 + $0x88] sm:$0xff]
    %v176 = vld [vmem:[#allocation3 + $0x90] sm:$0xff]
    %v177 = vld [vmem:[#allocation3 + $0x98] sm:$0xff]
    %v178 = vld [vmem:[#allocation3 + $0xa0] sm:$0xff]
    %v179 = vld [vmem:[#allocation3 + $0xa8] sm:$0xff]
    %v180 = vld [vmem:[#allocation3 + $0xb0] sm:$0xff]
    %v181 = vld [vmem:[#allocation3 + $0xb8] sm:$0xff]
    %v182 = vld [vmem:[#allocation3 + $0xc0] sm:$0xff]
    %v183 = vld [vmem:[#allocation3 + $0xc8] sm:$0xff]
    %v184 = vld [vmem:[#allocation3 + $0xd0] sm:$0xff]
    %v185 = vld [vmem:[#allocation3 + $0xd8] sm:$0xff]
    %v186 = vld [vmem:[#allocation3 + $0xe0] sm:$0xff]
    %v187 = vld [vmem:[#allocation3 + $0xe8] sm:$0xff]
    %v188 = vld [vmem:[#allocation3 + $0xf0] sm:$0xff]
    %v189 = vld [vmem:[#allocation3 + $0xf8] sm:$0xff]
    %v190 = vld [vmem:[#allocation3 + $0x100] sm:$0xff]
    %v191 = vld [vmem:[#allocation3 + $0x108] sm:$0xff]
    %v192 = vld [vmem:[#allocation3 + $0x110] sm:$0xff]
    %v193 = vld [vmem:[#allocation3 + $0x118] sm:$0xff]
    %v194 = vld [vmem:[#allocation3 + $0x120] sm:$0xff]
    %v195 = vld [vmem:[#allocation3 + $0x128] sm:$0xff]
    %v196 = vld [vmem:[#allocation3 + $0x130] sm:$0xff]
    %v197 = vld [vmem:[#allocation3 + $0x138] sm:$0xff]
    %v198 = vld [vmem:[#allocation3 + $0x140] sm:$0xff]
    %v199 = vld [vmem:[#allocation3 + $0x148] sm:$0xff]
    %v200 = vld [vmem:[#allocation3 + $0x150] sm:$0xff]
    %v201 = vld [vmem:[#allocation3 + $0x158] sm:$0xff]
    %v202 = vld [vmem:[#allocation3 + $0x160] sm:$0xff]
    %v203 = vld [vmem:[#allocation3 + $0x168] sm:$0xff]
    %v204 = vld [vmem:[#allocation3 + $0x170] sm:$0xff]
    %v205 = vld [vmem:[#allocation3 + $0x178] sm:$0xff]
    %v206 = vld [vmem:[#allocation3 + $0x180] sm:$0xff]
    %v207 = vld [vmem:[#allocation3 + $0x188] sm:$0xff]
    %v208 = vld [vmem:[#allocation3 + $0x190] sm:$0xff]
    %v209 = vld [vmem:[#allocation3 + $0x198] sm:$0xff]
    %v210 = vld [vmem:[#allocation3 + $0x1a0] sm:$0xff]
    %v211 = vld [vmem:[#allocation3 + $0x1a8] sm:$0xff]
    %v212 = vld [vmem:[#allocation3 + $0x1b0] sm:$0xff]
    %v213 = vld [vmem:[#allocation3 + $0x1b8] sm:$0xff]
    %v214 = vld [vmem:[#allocation3 + $0x1c0] sm:$0xff]
    %v215 = vld [vmem:[#allocation3 + $0x1c8] sm:$0xff]
    %v216 = vld [vmem:[#allocation3 + $0x1d0] sm:$0xff]
    %v217 = vld [vmem:[#allocation3 + $0x1d8] sm:$0xff]
    %v218 = vld [vmem:[#allocation3 + $0x1e0] sm:$0xff]
    %v219 = vld [vmem:[#allocation3 + $0x1e8] sm:$0xff]
    %v220 = vld [vmem:[#allocation3 + $0x1f0] sm:$0xff]
    %v221 = vld [vmem:[#allocation3 + $0x1f8] sm:$0xff]
    %v223 = vlaneseq
    %v224 = vshrl.u32 %v223, 7
    %v225 = vsub.s32 0, %v224
    %v226 = vrot.slane %v67, %v225
    %v227 = vlaneseq
    %v228 = vshrl.u32 %v227, 7
    %v229 = vsub.s32 1, %v228
    %v230 = vrot.slane %v67, %v229
    %233 = vmatprep.subr.mxu0 %v159
    %234 = vmatpush1.msra.mxu0 %v158
    %235 = vmatprep.subr.mxu0 %v161
    %236 = vmatpush1.msra.mxu0 %v160
    %237 = vmatprep.subr.mxu0 %v163
    %238 = vmatpush1.msra.mxu0 %v162
    %239 = vmatprep.subr.mxu0 %v165
    %240 = vmatpush1.msra.mxu0 %v164
    %241 = vmatprep.subr.mxu0 %v167
    %242 = vmatpush1.msra.mxu0 %v166
    %243 = vmatprep.subr.mxu0 %v169
    %244 = vmatpush1.msra.mxu0 %v168
    %245 = vmatprep.subr.mxu0 %v171
    %246 = vmatpush1.msra.mxu0 %v170
    %247 = vmatprep.subr.mxu0 %v173
    %248 = vmatpush1.msra.mxu0 %v172
    %249 = vmatprep.subr.mxu0 %v175
    %250 = vmatpush1.msra.mxu0 %v174
    %251 = vmatprep.subr.mxu0 %v177
    %252 = vmatpush1.msra.mxu0 %v176
    %253 = vmatprep.subr.mxu0 %v179
    %254 = vmatpush1.msra.mxu0 %v178
    %255 = vmatprep.subr.mxu0 %v181
    %256 = vmatpush1.msra.mxu0 %v180
    %257 = vmatprep.subr.mxu0 %v183
    %258 = vmatpush1.msra.mxu0 %v182
    %259 = vmatprep.subr.mxu0 %v185
    %260 = vmatpush1.msra.mxu0 %v184
    %261 = vmatprep.subr.mxu0 %v187
    %262 = vmatpush1.msra.mxu0 %v186
    %263 = vmatprep.subr.mxu0 %v189
    %264 = vmatpush1.msra.mxu0 %v188
    %265 = vmatprep.subr.mxu0 %v191
    %266 = vmatpush1.msra.mxu0 %v190
    %267 = vmatprep.subr.mxu0 %v193
    %268 = vmatpush1.msra.mxu0 %v192
    %269 = vmatprep.subr.mxu0 %v195
    %270 = vmatpush1.msra.mxu0 %v194
    %271 = vmatprep.subr.mxu0 %v197
    %272 = vmatpush1.msra.mxu0 %v196
    %273 = vmatprep.subr.mxu0 %v199
    %274 = vmatpush1.msra.mxu0 %v198
    %275 = vmatprep.subr.mxu0 %v201
    %276 = vmatpush1.msra.mxu0 %v200
    %277 = vmatprep.subr.mxu0 %v203
    %278 = vmatpush1.msra.mxu0 %v202
    %279 = vmatprep.subr.mxu0 %v205
    %280 = vmatpush1.msra.mxu0 %v204
    %281 = vmatprep.subr.mxu0 %v207
    %282 = vmatpush1.msra.mxu0 %v206
    %283 = vmatprep.subr.mxu0 %v209
    %284 = vmatpush1.msra.mxu0 %v208
    %285 = vmatprep.subr.mxu0 %v211
    %286 = vmatpush1.msra.mxu0 %v210
    %287 = vmatprep.subr.mxu0 %v213
    %288 = vmatpush1.msra.mxu0 %v212
    %289 = vmatprep.subr.mxu0 %v215
    %290 = vmatpush1.msra.mxu0 %v214
    %291 = vmatprep.subr.mxu0 %v217
    %292 = vmatpush1.msra.mxu0 %v216
    %293 = vmatprep.subr.mxu0 %v219
    %294 = vmatpush1.msra.mxu0 %v218
    %295 = vmatprep.subr.mxu0 %v221
    %296 = vmatpush1.msra.mxu0 %v220
    %297 = vmatprep.mubr.f32.mxu0 %v157
    %298 = vmatmul.mubr.f32.gmra.mrb[0].mxu0 %v156
    %v299 = vpop.f32.mrb[0].mxu0
    %v300 = vadd.f32 %v226, %v299
    %v301 = vpop.f32.mrb[0].mxu0
    %v302 = vadd.f32 %v230, %v301
    %303 = vdwg.mxu0
    %v304 = vmax.f32 %v300, 0.0
    %v305 = vmax.f32 %v302, 0.0
    %v307 = vlaneseq
    %v308 = vshrl.u32 %v307, 7
    %v309 = vsub.s32 0, %v308
    %v310 = vrot.slane %v69, %v309
    %v311 = vlaneseq
    %v312 = vshrl.u32 %v311, 7
    %v313 = vsub.s32 1, %v312
    %v314 = vrot.slane %v69, %v313
    %v317 = vmul.f32 %v304, %v310
    %v318 = vmul.f32 %v305, %v314
    %vm319 = vcmask 1043456
    %v320 = vsel %vm319, %v317, 0.0
    %v321 = vsel %vm319, %v318, 0.0
    %v322 = vadd.f32 %v320, %v321
    %323 = vadd.xlane.f32.xlu0 %v322
    %v324 = vpop.xlane.xlu0 %323
    %s325 = sld [smem:[#allocation2]]
    %v326 = vstv %s325
    %v327 = vadd.f32 %v324, %v326
    %vm328 = vcmask 3072
    %329 = vst.msk [vmem:[%s4] sm:$0xf] %vm328, %v327
    // Predicated region
    $region22: #{tpu_custom_call.1} parent=1 // pred_check
      _
    $region23: #{tpu_custom_call.1} parent=1 // pred_check_branch
      %331 = sbr.rel (0) target = $region25
    $region24: #{tpu_custom_call.1} parent=1 // pred_region
      _
    $region25: #{tpu_custom_call.1} parent=1 // pred_fallthru
      _
    // Predicated region
    $region26: #{tpu_custom_call.1} parent=1 // pred_check
      _
    $region27: #{tpu_custom_call.1} parent=1 // pred_check_branch
      %333 = sbr.rel (0) target = $region29
    $region28: #{tpu_custom_call.1} parent=1 // pred_region
      _
    $region29: #{tpu_custom_call.1} parent=1 // pred_fallthru
      _
    %334 = vsyncpa [#allocation4], 1

</llo_original>
